<compile_context>
chip_gen: v5e
topology: v5e:2x2
jax: 0.10.0
libtpu: 0.0.40
codegen_flags: <defaults>
</compile_context>

<pallas_src>
import jax
import jax.numpy as jnp
from jax.experimental import pallas as pl
from jax.experimental.pallas import tpu as pltpu


def _round_up(x, m):
    return (x + m - 1) // m * m


def residual_nn_kernel(x_ref, w1_ref, b1_ref, w2_ref, b2_ref, w3_ref, b3_ref, o_ref):
    """Whole forward fused on-chip: 3 MXU matmuls + VPU relu / residual add (all f32)."""
    x = x_ref[...]                                                       # (tb, D) f32

    # fc1 + ReLU
    h1 = jnp.dot(x, w1_ref[...], preferred_element_type=jnp.float32) + b1_ref[...]
    h1 = jnp.maximum(h1, 0.0)                                            # (tb, Hp)

    # fc2 + residual add + ReLU
    h2 = jnp.dot(h1, w2_ref[...], preferred_element_type=jnp.float32) + b2_ref[...]
    h2 = jnp.maximum(h2 + h1, 0.0)                                       # (tb, Hp)

    # fc3 (compact (tb, O) output block)
    out = jnp.dot(h2, w3_ref[...], preferred_element_type=jnp.float32) + b3_ref[...]
    o_ref[...] = out.astype(o_ref.dtype)


def prepare_params(w1, b1, w2, b2, w3, b3, lane=128):
    """One-time layout prep (hoisted out of the per-call path).

    Only the hidden dimension is zero-padded to 128 lanes (mathematically inert:
    padded columns/rows stay 0 through bias, ReLU and the residual).  The input
    dim (D) and output dim (O) are left unpadded so x and the output stay compact.
    """
    f32 = jnp.float32
    D, H = w1.shape
    O = w3.shape[1]
    Hp = _round_up(H, lane)

    def pad2(a, rows, cols):
        a = jnp.asarray(a, f32)
        return jnp.pad(a, ((0, rows - a.shape[0]), (0, cols - a.shape[1])))

    w1p = pad2(w1, D, Hp)                            # (D,  Hp)
    b1p = pad2(jnp.reshape(b1, (1, H)), 1, Hp)       # (1,  Hp)
    w2p = pad2(w2, Hp, Hp)                           # (Hp, Hp)
    b2p = pad2(jnp.reshape(b2, (1, H)), 1, Hp)       # (1,  Hp)
    w3p = pad2(w3, Hp, O)                            # (Hp, O)
    b3p = pad2(jnp.reshape(b3, (1, O)), 1, O)        # (1,  O)
    return (w1p, b1p, w2p, b2p, w3p, b3p)


def residual_nn_forward(x, prepared_params, *, tb=None):
    """Pallas forward pass for ResidualNN.  Returns (B, output_size) f32."""
    w1p, b1p, w2p, b2p, w3p, b3p = prepared_params
    B, D = x.shape
    Hp = w1p.shape[1]
    O = w3p.shape[1]

    # ---- batch tile: big tiles at large B (amortize ~0.35 us/step), >=2 grid steps
    # when B >= 256 so v7x's second TensorCore gets work; tiny B = single tile.
    if tb is None:
        if B <= 128:
            tb = _round_up(max(B, 8), 8)
        else:
            desired = 1024
            half = _round_up(pl.cdiv(B, 2), 128)
            tb = max(128, min(desired, half))
    Bp = _round_up(B, tb)
    grid = (Bp // tb,)

    # Only cheap row-padding of the batch (no lane padding, no dtype cast).
    xp = x.astype(jnp.float32)
    if Bp != B:
        xp = jnp.pad(xp, ((0, Bp - B), (0, 0)))

    # ---- chip-aware VMEM budget (<= half of physical VMEM: ~32 MiB v7x, ~64 MiB v5e/v6e)
    try:
        vmem_cap = int(pltpu.get_tpu_info().vmem_capacity_bytes)
    except Exception:
        vmem_cap = 128 * 1024 * 1024
    vmem_need = (2 * tb * D * 4                                   # x tiles (double-buffered)
                 + 2 * tb * O * 4                                 # out tiles
                 + 2 * (D * Hp + Hp * Hp + Hp * O) * 4            # weights
                 + 2 * (2 * Hp + O) * 4                           # biases
                 + 3 * tb * Hp * 4)                               # live f32 intermediates
    vmem_limit = int(min(max(2 * vmem_need, 4 * 1024 * 1024), vmem_cap // 2))

    # Advisory cost estimate for XLA's scheduler around the custom call.
    cost = pl.CostEstimate(
        flops=int(2 * Bp * (D * Hp + Hp * Hp + Hp * O)),
        transcendentals=0,
        bytes_accessed=int(Bp * D * 4
                           + (w1p.size + w2p.size + w3p.size) * 4
                           + (b1p.size + b2p.size + b3p.size) * 4
                           + Bp * O * 4),
    )

    out_padded = pl.pallas_call(
        residual_nn_kernel,
        out_shape=jax.ShapeDtypeStruct((Bp, O), jnp.float32),
        grid_spec=pl.GridSpec(
            grid=grid,
            in_specs=[
                # x: one batch tile per grid step; full (unpadded) last dim D.
                pl.BlockSpec((tb, D), lambda i: (i, 0)),
                # Weights/biases: constant (0, 0) index_map -> DMA'd once, VMEM-resident
                # across batch tiles (~75 KiB f32 total, so double-buffering is cheap).
                pl.BlockSpec((D, Hp), lambda i: (0, 0)),    # w1
                pl.BlockSpec((1, Hp), lambda i: (0, 0)),    # b1
                pl.BlockSpec((Hp, Hp), lambda i: (0, 0)),   # w2
                pl.BlockSpec((1, Hp), lambda i: (0, 0)),    # b2
                pl.BlockSpec((Hp, O), lambda i: (0, 0)),    # w3
                pl.BlockSpec((1, O), lambda i: (0, 0)),     # b3
            ],
            # Compact output block: last dim == full array dim (O=1), 4 B/row written.
            out_specs=pl.BlockSpec((tb, O), lambda i: (i, 0)),
        ),
        compiler_params=pltpu.CompilerParams(
            dimension_semantics=("parallel",),   # batch tiles across TCs (v7x megacore)
            vmem_limit_bytes=vmem_limit,
        ),
        cost_estimate=cost,
    )(xp, w1p, b1p, w2p, b2p, w3p, b3p)

    return out_padded[:B]


def init_params(key, input_size, hidden_size, output_size, dtype=jnp.float32):
    # Deterministic init mimicking torch.nn.Linear default U[-1/sqrt(fan_in), +1/sqrt(fan_in)].
    def linear(k, fan_in, fan_out):
        kw, kb = jax.random.split(k)
        bound = 1.0 / jnp.sqrt(jnp.float32(fan_in))
        w = jax.random.uniform(kw, (fan_in, fan_out), dtype, -bound, bound)
        b = jax.random.uniform(kb, (1, fan_out), dtype, -bound, bound)
        return w, b

    k1, k2, k3 = jax.random.split(key, 3)
    w1, b1 = linear(k1, input_size, hidden_size)
    w2, b2 = linear(k2, hidden_size, hidden_size)
    w3, b3 = linear(k3, hidden_size, output_size)
    return w1, b1, w2, b2, w3, b3


def reference_forward(x, w1, b1, w2, b2, w3, b3):
    """Pure-JAX f32 reference matching the PyTorch module."""
    f32 = jnp.float32
    h1 = jnp.maximum(jnp.dot(x, w1, preferred_element_type=f32) + b1, 0.0)
    h2 = jnp.maximum(jnp.dot(h1, w2, preferred_element_type=f32) + b2 + h1, 0.0)
    return jnp.dot(h2, w3, preferred_element_type=f32) + b3


if __name__ == "__main__":
    input_size = 16
    hidden_size = 32
    output_size = 1

    key = jax.random.PRNGKey(0)
    kx, kp, kx2 = jax.random.split(key, 3)
    raw_params = init_params(kp, input_size, hidden_size, output_size)
    prepared = prepare_params(*raw_params)   # one-time weight prep (hoisted out of forward)

    # 1) Module-natural small batch, single tile -> tight check vs the f32 reference.
    x_small = jax.random.normal(kx, (8, input_size), jnp.float32)
    out_small = jax.block_until_ready(residual_nn_forward(x_small, prepared))
    ref_small = reference_forward(x_small, *raw_params)
    assert out_small.shape == (8, output_size), out_small.shape
    assert jnp.allclose(out_small, ref_small, atol=1e-5, rtol=1e-5), "f32 small-batch mismatch"

    # 2) Large batch: tb=512 -> grid=(2,) (both TensorCores on v7x), still pure f32.
    x_big = jax.random.normal(kx2, (1024, input_size), jnp.float32)
    out_big = jax.block_until_ready(residual_nn_forward(x_big, prepared))
    ref_big = reference_forward(x_big, *raw_params)
    assert out_big.shape == (1024, output_size), out_big.shape
    assert jnp.allclose(out_big, ref_big, atol=1e-4, rtol=1e-4), "f32 large-batch mismatch"

    print("KERNEL_OK")
</pallas_src>

<mosaic_0001>
module attributes {stable_mosaic.version = 11 : i64} {
  func.func @residual_nn_kernel(%arg0: i32, %arg1: memref<8x16xf32, #tpu.memory_space<vmem>>, %arg2: memref<16x128xf32, #tpu.memory_space<vmem>>, %arg3: memref<1x128xf32, #tpu.memory_space<vmem>>, %arg4: memref<128x128xf32, #tpu.memory_space<vmem>>, %arg5: memref<1x128xf32, #tpu.memory_space<vmem>>, %arg6: memref<128x1xf32, #tpu.memory_space<vmem>>, %arg7: memref<1x1xf32, #tpu.memory_space<vmem>>, %arg8: memref<8x1xf32, #tpu.memory_space<vmem>>) attributes {dimension_semantics = [#tpu.dimension_semantics<parallel>], iteration_bounds = array<i64: 1>, scalar_prefetch = 0 : i64, scratch_operands = 0 : i64, tpu.core_type = #tpu.core_type<tc>, window_params = [{transform_indices = @transform_0, window_bounds = array<i64: 8, 16>}, {pipeline_mode = #tpu.pipeline_mode<synchronous>, transform_indices = @transform_1, window_bounds = array<i64: 16, 128>}, {pipeline_mode = #tpu.pipeline_mode<synchronous>, transform_indices = @transform_2, window_bounds = array<i64: 1, 128>}, {pipeline_mode = #tpu.pipeline_mode<synchronous>, transform_indices = @transform_3, window_bounds = array<i64: 128, 128>}, {pipeline_mode = #tpu.pipeline_mode<synchronous>, transform_indices = @transform_4, window_bounds = array<i64: 1, 128>}, {pipeline_mode = #tpu.pipeline_mode<synchronous>, transform_indices = @transform_5, window_bounds = array<i64: 128, 1>}, {pipeline_mode = #tpu.pipeline_mode<synchronous>, transform_indices = @transform_6, window_bounds = array<i64: 1, 1>}, {transform_indices = @transform_7, window_bounds = array<i64: 8, 1>}]} {
    %c0 = arith.constant 0 : index
    %c0_0 = arith.constant 0 : index
    %0 = vector.load %arg1[%c0, %c0_0] : memref<8x16xf32, #tpu.memory_space<vmem>>, vector<8x16xf32>
    %c0_1 = arith.constant 0 : index
    %c0_2 = arith.constant 0 : index
    %1 = vector.load %arg2[%c0_1, %c0_2] : memref<16x128xf32, #tpu.memory_space<vmem>>, vector<16x128xf32>
    %cst = arith.constant dense<0.000000e+00> : vector<8x128xf32>
    %2 = tpu.matmul %0, %1, %cst {dimension_numbers = #tpu.dot_dimension_numbers<[1], [0], [0], [1], [0, 0, 1, 1], [], []>} : vector<8x16xf32>, vector<16x128xf32>, vector<8x128xf32> -> vector<8x128xf32>
    %c0_3 = arith.constant 0 : index
    %c0_4 = arith.constant 0 : index
    %3 = vector.load %arg3[%c0_3, %c0_4] : memref<1x128xf32, #tpu.memory_space<vmem>>, vector<1x128xf32>
    %4 = vector.broadcast %3 : vector<1x128xf32> to vector<8x128xf32>
    %5 = arith.addf %2, %4 : vector<8x128xf32>
    %cst_5 = arith.constant 0.000000e+00 : f32
    %6 = vector.broadcast %cst_5 : f32 to vector<8x128xf32>
    %7 = arith.maximumf %5, %6 : vector<8x128xf32>
    %c0_6 = arith.constant 0 : index
    %c0_7 = arith.constant 0 : index
    %8 = vector.load %arg4[%c0_6, %c0_7] : memref<128x128xf32, #tpu.memory_space<vmem>>, vector<128x128xf32>
    %cst_8 = arith.constant dense<0.000000e+00> : vector<8x128xf32>
    %9 = tpu.matmul %7, %8, %cst_8 {dimension_numbers = #tpu.dot_dimension_numbers<[1], [0], [0], [1], [0, 0, 1, 1], [], []>} : vector<8x128xf32>, vector<128x128xf32>, vector<8x128xf32> -> vector<8x128xf32>
    %c0_9 = arith.constant 0 : index
    %c0_10 = arith.constant 0 : index
    %10 = vector.load %arg5[%c0_9, %c0_10] : memref<1x128xf32, #tpu.memory_space<vmem>>, vector<1x128xf32>
    %11 = vector.broadcast %10 : vector<1x128xf32> to vector<8x128xf32>
    %12 = arith.addf %9, %11 : vector<8x128xf32>
    %13 = arith.addf %12, %7 : vector<8x128xf32>
    %cst_11 = arith.constant 0.000000e+00 : f32
    %14 = vector.broadcast %cst_11 : f32 to vector<8x128xf32>
    %15 = arith.maximumf %13, %14 : vector<8x128xf32>
    %c0_12 = arith.constant 0 : index
    %c0_13 = arith.constant 0 : index
    %16 = vector.load %arg6[%c0_12, %c0_13] : memref<128x1xf32, #tpu.memory_space<vmem>>, vector<128x1xf32>
    %cst_14 = arith.constant dense<0.000000e+00> : vector<8x1xf32>
    %17 = tpu.matmul %15, %16, %cst_14 {dimension_numbers = #tpu.dot_dimension_numbers<[1], [0], [0], [1], [0, 0, 1, 1], [], []>} : vector<8x128xf32>, vector<128x1xf32>, vector<8x1xf32> -> vector<8x1xf32>
    %c0_15 = arith.constant 0 : index
    %c0_16 = arith.constant 0 : index
    %18 = vector.load %arg7[%c0_15, %c0_16] : memref<1x1xf32, #tpu.memory_space<vmem>>, vector<1x1xf32>
    %19 = vector.broadcast %18 : vector<1x1xf32> to vector<8x1xf32>
    %20 = arith.addf %17, %19 : vector<8x1xf32>
    %c0_17 = arith.constant 0 : index
    %c0_18 = arith.constant 0 : index
    %21 = vector.load %arg8[%c0_17, %c0_18] : memref<8x1xf32, #tpu.memory_space<vmem>>, vector<8x1xf32>
    tpu.vector_store %arg8[%c0_17, %c0_18], %20 {strides = array<i32>} : memref<8x1xf32, #tpu.memory_space<vmem>>, vector<8x1xf32>,
    return
  }
  func.func @transform_0(%arg0: i32) -> (i32, i32) {
    %c0_i32 = arith.constant 0 : i32
    %c0_i32_0 = arith.constant 0 : i32
    return %arg0, %c0_i32 : i32, i32
  }
  func.func @transform_1(%arg0: i32) -> (i32, i32) {
    %c0_i32 = arith.constant 0 : i32
    %c0_i32_0 = arith.constant 0 : i32
    %c0_i32_1 = arith.constant 0 : i32
    return %c0_i32, %c0_i32_0 : i32, i32
  }
  func.func @transform_2(%arg0: i32) -> (i32, i32) {
    %c0_i32 = arith.constant 0 : i32
    %c0_i32_0 = arith.constant 0 : i32
    %c0_i32_1 = arith.constant 0 : i32
    return %c0_i32, %c0_i32_0 : i32, i32
  }
  func.func @transform_3(%arg0: i32) -> (i32, i32) {
    %c0_i32 = arith.constant 0 : i32
    %c0_i32_0 = arith.constant 0 : i32
    %c0_i32_1 = arith.constant 0 : i32
    return %c0_i32, %c0_i32_0 : i32, i32
  }
  func.func @transform_4(%arg0: i32) -> (i32, i32) {
    %c0_i32 = arith.constant 0 : i32
    %c0_i32_0 = arith.constant 0 : i32
    %c0_i32_1 = arith.constant 0 : i32
    return %c0_i32, %c0_i32_0 : i32, i32
  }
  func.func @transform_5(%arg0: i32) -> (i32, i32) {
    %c0_i32 = arith.constant 0 : i32
    %c0_i32_0 = arith.constant 0 : i32
    %c0_i32_1 = arith.constant 0 : i32
    return %c0_i32, %c0_i32_0 : i32, i32
  }
  func.func @transform_6(%arg0: i32) -> (i32, i32) {
    %c0_i32 = arith.constant 0 : i32
    %c0_i32_0 = arith.constant 0 : i32
    %c0_i32_1 = arith.constant 0 : i32
    return %c0_i32, %c0_i32_0 : i32, i32
  }
  func.func @transform_7(%arg0: i32) -> (i32, i32) {
    %c0_i32 = arith.constant 0 : i32
    %c0_i32_0 = arith.constant 0 : i32
    return %arg0, %c0_i32 : i32, i32
  }
}

</mosaic_0001>

<llo_original>
// kernel: tpu_custom_call.1
$region0: #{tpu_custom_call.1}
  #allocation0 [shape = 'u32[]', space=smem, size = 0x4, offset = 0x4, fixed_abs, tag = 'smem constant byte address 0x4 - core index']
  #allocation1 [shape = 'u32[72,128]{1,0:T(1,128)}', space=vmem, size = 0x9000, scoped, tag = 'internal scratch']
  #allocation2 [shape = 'f32[1,1]{1,0:T(1,128)S(1)}', space=vmem, size = 0x200, scoped, tag = 'scoped memory for tpu_custom_call.1']
  %s0 = inlined_call_operand.hbm [shape: f32[8,16], index: 0, kind: input, shape index: {}]
  %s1 = inlined_call_operand.hbm [shape: f32[16,128], index: 1, kind: input, shape index: {}]
  %s2 = inlined_call_operand.vmem [shape: f32[1,128], index: 2, kind: input, shape index: {}]
  %s3 = inlined_call_operand.vmem [shape: f32[128,128], index: 3, kind: input, shape index: {}]
  %s4 = inlined_call_operand.vmem [shape: f32[1,128], index: 4, kind: input, shape index: {}]
  %s5 = inlined_call_operand.vmem [shape: f32[128,1], index: 5, kind: input, shape index: {}]
  %s6 = inlined_call_operand.<no memory space> [shape: f32[1,1], index: 6, kind: input, shape index: {}]
  %s7 = inlined_call_operand.vmem [shape: f32[8,1], index: 7, kind: output, shape index: {}]
  %s8 = sld [smem:[#allocation0]]
  $region46: #{tpu_custom_call.1} parent=0
    _
  %s10 = ssub.s32 1, %s8
  %s11 = scalar_select 0, %s10, %s8
  %v12 = vstv %s6
  %13 = vst [vmem:[#allocation2] sm:$0x1] %v12
  $region1: #{tpu_custom_call.1} parent=0
    #allocation3 [shape = 'u8[4096]{0}', space=vmem, size = 0x1000, scoped, tag = 'input window, operand 0, single buffered']
    #allocation4 [shape = 's32[1]{0}', space=sflag, size = 0x4, scoped, tag = 'scoped memory for tpu_custom_call.1']
    #allocation5 [shape = 'u8[8192]{0}', space=vmem, size = 0x2000, scoped, tag = 'input window, operand 1, single buffered']
    #allocation6 [shape = 's32[1]{0}', space=sflag, size = 0x4, scoped, tag = 'scoped memory for tpu_custom_call.1']
    %14 = vsyncpa [#allocation4], 0
    %15 = vsyncpa [#allocation6], 0
    // Predicated region
    $region2: #{tpu_custom_call.1} parent=1 // pred_check
      _
    $region3: #{tpu_custom_call.1} parent=1 // pred_check_branch
      %17 = sbr.rel (0) target = $region5
    $region4: #{tpu_custom_call.1} parent=1 // pred_region
      %19 = vsyncadd [#allocation4], 0
      %s21 = sshll.u32 %s0, 4
      %s22 = int_to_ptr.hbm [resolvable:$true] %s21
      %s23 = sshll.u32 [#allocation3], 4
      %s24 = int_to_ptr.vmem [resolvable:$true] %s23
      %26 = dma.hbm_to_vmem [thread:$0]  %s22, 128, %s24, [#allocation4]
    $region5: #{tpu_custom_call.1} parent=1 // pred_fallthru
      _
    // Predicated region
    $region6: #{tpu_custom_call.1} parent=1 // pred_check
      _
    $region7: #{tpu_custom_call.1} parent=1 // pred_check_branch
      %28 = sbr.rel (0) target = $region9
    $region8: #{tpu_custom_call.1} parent=1 // pred_region
      %30 = vsyncadd [#allocation6], 0
      %s31 = sshll.u32 %s1, 4
      %s32 = int_to_ptr.hbm [resolvable:$true] %s31
      %s33 = sshll.u32 [#allocation5], 4
      %s34 = int_to_ptr.vmem [resolvable:$true] %s33
      %39 = dma.hbm_to_vmem [thread:$0]  %s32, 256, %s34, [#allocation6], 128, 128, 8
    $region9: #{tpu_custom_call.1} parent=1 // pred_fallthru
      _
    // Predicated region
    $region10: #{tpu_custom_call.1} parent=1 // pred_check
      _
    $region11: #{tpu_custom_call.1} parent=1 // pred_check_branch
      %41 = sbr.rel (0) target = $region13
    $region12: #{tpu_custom_call.1} parent=1 // pred_region
      _
    $region13: #{tpu_custom_call.1} parent=1 // pred_fallthru
      _
    // Predicated region
    $region14: #{tpu_custom_call.1} parent=1 // pred_check
      _
    $region15: #{tpu_custom_call.1} parent=1 // pred_check_branch
      %43 = sbr.rel (0) target = $region17
    $region16: #{tpu_custom_call.1} parent=1 // pred_region
      _
    $region17: #{tpu_custom_call.1} parent=1 // pred_fallthru
      _
    // Predicated region
    $region18: #{tpu_custom_call.1} parent=1 // pred_check
      _
    $region19: #{tpu_custom_call.1} parent=1 // pred_check_branch
      %45 = sbr.rel (0) target = $region21
    $region20: #{tpu_custom_call.1} parent=1 // pred_region
      _
    $region21: #{tpu_custom_call.1} parent=1 // pred_fallthru
      _
    // Predicated region
    $region22: #{tpu_custom_call.1} parent=1 // pred_check
      _
    $region23: #{tpu_custom_call.1} parent=1 // pred_check_branch
      %47 = sbr.rel (0) target = $region25
    $region24: #{tpu_custom_call.1} parent=1 // pred_region
      _
    $region25: #{tpu_custom_call.1} parent=1 // pred_fallthru
      _
    // Predicated region
    $region26: #{tpu_custom_call.1} parent=1 // pred_check
      _
    $region27: #{tpu_custom_call.1} parent=1 // pred_check_branch
      %49 = sbr.rel (0) target = $region29
    $region28: #{tpu_custom_call.1} parent=1 // pred_region
      _
    $region29: #{tpu_custom_call.1} parent=1 // pred_fallthru
      _
    // Predicated region
    $region30: #{tpu_custom_call.1} parent=1 // pred_check
      _
    $region31: #{tpu_custom_call.1} parent=1 // pred_check_branch
      %51 = sbr.rel (0) target = $region33
    $region32: #{tpu_custom_call.1} parent=1 // pred_region
      %53 = dma.done [#allocation4], 128
    $region33: #{tpu_custom_call.1} parent=1 // pred_fallthru
      _
    // Predicated region
    $region34: #{tpu_custom_call.1} parent=1 // pred_check
      _
    $region35: #{tpu_custom_call.1} parent=1 // pred_check_branch
      %55 = sbr.rel (0) target = $region37
    $region36: #{tpu_custom_call.1} parent=1 // pred_region
      %57 = dma.done [#allocation6], 256
    $region37: #{tpu_custom_call.1} parent=1 // pred_fallthru
      _
    %v58 = vld [vmem:[#allocation3] sm:$0xff]
    %v59 = vld [vmem:[#allocation5] sm:$0xff]
    %v60 = vld [vmem:[#allocation5 + $0x8] sm:$0xff]
    %v61 = vld [vmem:[%s2] sm:$0x1]
    %v63 = vperm.slane %v61, 0
    %vm65 = vcmask 130048
    %v67 = vsel %vm65, %v58, 0
    %69 = vmatpush.msra.mxu0 0.0
    %70 = vmatpush.msra.mxu0 0.0
    %71 = vmatpush.msra.mxu0 0.0
    %72 = vmatpush.msra.mxu0 0.0
    %73 = vmatpush.msra.mxu0 0.0
    %74 = vmatpush.msra.mxu0 0.0
    %75 = vmatpush.msra.mxu0 0.0
    %76 = vmatpush.msra.mxu0 0.0
    %77 = vmatpush.msra.mxu0 0.0
    %78 = vmatpush.msra.mxu0 0.0
    %79 = vmatpush.msra.mxu0 0.0
    %80 = vmatpush.msra.mxu0 0.0
    %81 = vmatpush.msra.mxu0 0.0
    %82 = vmatpush.msra.mxu0 0.0
    %83 = vmatpush.msra.mxu0 %v60
    %84 = vmatpush.msra.mxu0 %v59
    %85 = vmatmul.f32.gmra.mxu0 %v67
    %v86 = vpop.f32.mrf.mxu0
    %v87 = vadd.f32 %v63, %v86
    %88 = vdwg.mxu0
    %v89 = vmax.f32 %v87, 0.0
    %v90 = vld [vmem:[%s3] sm:$0xff]
    %v91 = vld [vmem:[%s3 + $0x8] sm:$0xff]
    %v92 = vld [vmem:[%s3 + $0x10] sm:$0xff]
    %v93 = vld [vmem:[%s3 + $0x18] sm:$0xff]
    %v94 = vld [vmem:[%s3 + $0x20] sm:$0xff]
    %v95 = vld [vmem:[%s3 + $0x28] sm:$0xff]
    %v96 = vld [vmem:[%s3 + $0x30] sm:$0xff]
    %v97 = vld [vmem:[%s3 + $0x38] sm:$0xff]
    %v98 = vld [vmem:[%s3 + $0x40] sm:$0xff]
    %v99 = vld [vmem:[%s3 + $0x48] sm:$0xff]
    %v100 = vld [vmem:[%s3 + $0x50] sm:$0xff]
    %v101 = vld [vmem:[%s3 + $0x58] sm:$0xff]
    %v102 = vld [vmem:[%s3 + $0x60] sm:$0xff]
    %v103 = vld [vmem:[%s3 + $0x68] sm:$0xff]
    %v104 = vld [vmem:[%s3 + $0x70] sm:$0xff]
    %v105 = vld [vmem:[%s3 + $0x78] sm:$0xff]
    %v106 = vld [vmem:[%s4] sm:$0x1]
    %v108 = vperm.slane %v106, 0
    %110 = vmatpush.msra.mxu0 %v105
    %111 = vmatpush.msra.mxu0 %v104
    %112 = vmatpush.msra.mxu0 %v103
    %113 = vmatpush.msra.mxu0 %v102
    %114 = vmatpush.msra.mxu0 %v101
    %115 = vmatpush.msra.mxu0 %v100
    %116 = vmatpush.msra.mxu0 %v99
    %117 = vmatpush.msra.mxu0 %v98
    %118 = vmatpush.msra.mxu0 %v97
    %119 = vmatpush.msra.mxu0 %v96
    %120 = vmatpush.msra.mxu0 %v95
    %121 = vmatpush.msra.mxu0 %v94
    %122 = vmatpush.msra.mxu0 %v93
    %123 = vmatpush.msra.mxu0 %v92
    %124 = vmatpush.msra.mxu0 %v91
    %125 = vmatpush.msra.mxu0 %v90
    %126 = vmatmul.f32.gmra.mxu0 %v89
    %v127 = vpop.f32.mrf.mxu0
    %v128 = vadd.f32 %v108, %v127
    %129 = vdwg.mxu0
    %v130 = vadd.f32 %v128, %v89
    %v131 = vmax.f32 %v130, 0.0
    %v132 = vld [vmem:[%s5] sm:$0xff]
    %v133 = vld [vmem:[%s5 + $0x8] sm:$0xff]
    %v134 = vld [vmem:[%s5 + $0x10] sm:$0xff]
    %v135 = vld [vmem:[%s5 + $0x18] sm:$0xff]
    %v136 = vld [vmem:[%s5 + $0x20] sm:$0xff]
    %v137 = vld [vmem:[%s5 + $0x28] sm:$0xff]
    %v138 = vld [vmem:[%s5 + $0x30] sm:$0xff]
    %v139 = vld [vmem:[%s5 + $0x38] sm:$0xff]
    %v140 = vld [vmem:[%s5 + $0x40] sm:$0xff]
    %v141 = vld [vmem:[%s5 + $0x48] sm:$0xff]
    %v142 = vld [vmem:[%s5 + $0x50] sm:$0xff]
    %v143 = vld [vmem:[%s5 + $0x58] sm:$0xff]
    %v144 = vld [vmem:[%s5 + $0x60] sm:$0xff]
    %v145 = vld [vmem:[%s5 + $0x68] sm:$0xff]
    %v146 = vld [vmem:[%s5 + $0x70] sm:$0xff]
    %v147 = vld [vmem:[%s5 + $0x78] sm:$0xff]
    %v148 = vld [vmem:[#allocation2] sm:$0x1]
    %v150 = vperm.slane %v148, 0
    %152 = vmatpush.msra.mxu0 %v147
    %153 = vmatpush.msra.mxu0 %v146
    %154 = vmatpush.msra.mxu0 %v145
    %155 = vmatpush.msra.mxu0 %v144
    %156 = vmatpush.msra.mxu0 %v143
    %157 = vmatpush.msra.mxu0 %v142
    %158 = vmatpush.msra.mxu0 %v141
    %159 = vmatpush.msra.mxu0 %v140
    %160 = vmatpush.msra.mxu0 %v139
    %161 = vmatpush.msra.mxu0 %v138
    %162 = vmatpush.msra.mxu0 %v137
    %163 = vmatpush.msra.mxu0 %v136
    %164 = vmatpush.msra.mxu0 %v135
    %165 = vmatpush.msra.mxu0 %v134
    %166 = vmatpush.msra.mxu0 %v133
    %167 = vmatpush.msra.mxu0 %v132
    %168 = vmatmul.f32.gmra.mxu0 %v131
    %v169 = vpop.f32.mrf.mxu0
    %v170 = vadd.f32 %v150, %v169
    %171 = vdwg.mxu0
    %vm172 = vcmask 7168
    %173 = vst.msk [vmem:[%s7] sm:$0xff] %vm172, %v170
    // Predicated region
    $region38: #{tpu_custom_call.1} parent=1 // pred_check
      _
    $region39: #{tpu_custom_call.1} parent=1 // pred_check_branch
      %175 = sbr.rel (0) target = $region41
    $region40: #{tpu_custom_call.1} parent=1 // pred_region
      _
    $region41: #{tpu_custom_call.1} parent=1 // pred_fallthru
      _
    // Predicated region
    $region42: #{tpu_custom_call.1} parent=1 // pred_check
      _
    $region43: #{tpu_custom_call.1} parent=1 // pred_check_branch
      %177 = sbr.rel (0) target = $region45
    $region44: #{tpu_custom_call.1} parent=1 // pred_region
      _
    $region45: #{tpu_custom_call.1} parent=1 // pred_fallthru
      _
    %178 = vsyncpa [#allocation4], 1
    %179 = vsyncpa [#allocation6], 1

</llo_original>
